<compile_context>
chip_gen: v5e
topology: v5e:2x2
jax: 0.10.0
libtpu: 0.0.40
codegen_flags: <defaults>
</compile_context>

<pallas_src>
import jax
import jax.numpy as jnp
from jax.experimental import pallas as pl
from jax.experimental.pallas import tpu as pltpu


_VMEM_TILE_BUDGET = 20 * 1024 * 1024   # budget for the double-buffered in/out blocks
_VMEM_LIMIT_BYTES = 32 * 1024 * 1024   # <= physical VMEM on v5e/v6e/v7x; > v5e 16 MiB default
_MAX_TILE_PIXELS = 32768


def _focus_kernel(x_ref, w_ref, bias_ref, o_ref):
    # x_ref:    (K, TP)    space-to-depth pixels for this tile (pixels on lanes)
    # w_ref:    (Cout, K)  1x1 conv weight with BN scale folded in
    # bias_ref: (Cout, 1)  folded BN bias (f32, broadcast over lanes)
    # o_ref:    (Cout, TP)
    y = jnp.dot(w_ref[...], x_ref[...], preferred_element_type=jnp.float32)
    y = y + bias_ref[...]

    # Mish(y) = y * tanh(softplus(y)) = y * (1 - 2 / ((1 + e^y)^2 + 1))
    # Clamp the exponent so (1+e)^2 stays finite in f32; for y >= 30 the
    # correction term is already 0 in f32 (matches PyTorch's softplus
    # threshold=20 pass-through to within f32 rounding).
    e = jnp.exp(jnp.minimum(y, 30.0))
    d = (1.0 + e) * (1.0 + e) + 1.0
    r = pl.reciprocal(d, approx=True)        # EUP slot (cheap)
    r = r * (2.0 - d * r)                    # one Newton step -> full f32 accuracy
    o_ref[...] = (y * (1.0 - 2.0 * r)).astype(o_ref.dtype)


def _round_up(n, m):
    return ((n + m - 1) // m) * m


def _choose_tile_pixels(npix, batch, k, cout, itemsize, tile_pixels=None):
    """Pick the pixel (lane) tile size.

    Largest tile that fits the VMEM budget (double-buffered input (K, tp) and
    output (Cout, tp) blocks), as a multiple of 128 (or the full pixel count),
    preferring a size that divides npix so the tail block needs no masking,
    and keeping >= 2 grid blocks when batch == 1 so both v7x TensorCores work.
    """
    if npix <= 0:
        return 1
    # Sublane tiling: 8 rows for 32-bit, 16 for bf16, 32 for 8-bit dtypes.
    sublane = 8 * max(1, 4 // max(1, itemsize))
    per_pixel = 2 * (_round_up(k, sublane) + _round_up(cout, sublane)) * itemsize
    cap = _VMEM_TILE_BUDGET // max(1, per_pixel)
    if tile_pixels is not None:
        cap = min(cap, int(tile_pixels))
    cap = max(128, min(cap, _MAX_TILE_PIXELS))
    # >= 2 parallel grid blocks for v7x's two TensorCores when batch == 1.
    if batch == 1 and npix >= 256:
        cap = min(cap, max(128, (pl.cdiv(npix, 2) // 128) * 128))
    if npix <= cap:
        return npix                                  # single full-extent block
    cap = max(128, (cap // 128) * 128)
    # Prefer a tile that divides npix exactly (no masked tail) as long as it
    # is not much smaller than the VMEM-sized cap.
    lo = max(128, (cap // 2 // 128) * 128)
    for t in range(cap, lo - 1, -128):
        if npix % t == 0:
            return t
    return cap                                       # masked tail block


def focus_forward(x_nchw, conv_w, bn_gamma, bn_beta, bn_mean, bn_var,
                  eps=1e-5, tile_pixels=None):
    """Focus forward pass.

    Args:
      x_nchw : (B, C, H, W) input, H and W even (f32 or bf16; dtype preserved).
      conv_w : (Cout, 4*C, 1, 1) conv weight (no bias).
      bn_*   : (Cout,) BatchNorm parameters / running stats (eval mode).
      tile_pixels : optional upper bound on the pixel (lane) tile size.
    Returns:
      (B, Cout, H//2, W//2) in x_nchw.dtype.
    """
    B, C, H, W = x_nchw.shape
    assert H % 2 == 0 and W % 2 == 0, "Focus requires even H and W"
    Cout = conv_w.shape[0]
    K = 4 * C
    assert conv_w.shape == (Cout, K, 1, 1), conv_w.shape
    H2, W2 = H // 2, W // 2
    npix = H2 * W2

    # --- space-to-depth as ONE reshape+transpose (single fused copy pass) ----
    # x.reshape(B, C, H2, 2, W2, 2) axes: (b, c, i, hp, j, wp)
    # transpose to (b, wp, hp, c, i, j); flattening (wp, hp, c) gives channel
    # index (2*wp + hp)*C + c, which is exactly torch.cat order:
    #   [::2,::2], [1::2,::2], [::2,1::2], [1::2,1::2]
    sd = jnp.transpose(x_nchw.reshape(B, C, H2, 2, W2, 2),
                       (0, 5, 3, 1, 2, 4)).reshape(B, K, npix)

    # --- fold eval-mode BN into weight / bias ---------------------------------
    scale = bn_gamma.astype(jnp.float32) * jax.lax.rsqrt(
        bn_var.astype(jnp.float32) + eps)                           # (Cout,)
    w_folded = (conv_w[:, :, 0, 0].astype(jnp.float32)
                * scale[:, None]).astype(x_nchw.dtype)              # (Cout, K)
    bias = (bn_beta.astype(jnp.float32)
            - bn_mean.astype(jnp.float32) * scale).reshape(Cout, 1)  # f32

    # --- pixel tiling (lane dimension); no pad, no post-slice ----------------
    itemsize = jnp.dtype(x_nchw.dtype).itemsize
    tp = _choose_tile_pixels(npix, B, K, Cout, itemsize, tile_pixels)
    n_blk = pl.cdiv(npix, tp)          # partial tail block: writes are masked
    grid = (B, n_blk)

    cost = pl.CostEstimate(
        flops=2 * B * Cout * K * npix,
        transcendentals=2 * B * Cout * npix,                 # exp + reciprocal
        bytes_accessed=(sd.size * itemsize + w_folded.size * itemsize
                        + bias.size * 4 + B * Cout * npix * itemsize))

    out = pl.pallas_call(
        _focus_kernel,
        out_shape=jax.ShapeDtypeStruct((B, Cout, npix), x_nchw.dtype),
        grid_spec=pltpu.PrefetchScalarGridSpec(
            num_scalar_prefetch=0,
            grid=grid,
            in_specs=[
                # batch dim squeezed out of the kernel ref (block dim = None)
                pl.BlockSpec((None, K, tp), lambda b, p: (b, 0, p)),
                pl.BlockSpec((Cout, K), lambda b, p: (0, 0)),
                pl.BlockSpec((Cout, 1), lambda b, p: (0, 0)),
            ],
            out_specs=pl.BlockSpec((None, Cout, tp), lambda b, p: (b, 0, p)),
        ),
        compiler_params=pltpu.CompilerParams(
            dimension_semantics=("parallel", "parallel"),
            vmem_limit_bytes=_VMEM_LIMIT_BYTES),
        cost_estimate=cost,
    )(sd, w_folded, bias)

    # (B, Cout, H2*W2) -> (B, Cout, H2, W2): pure reshape, no data movement.
    return out.reshape(B, Cout, H2, W2)


def _reference(x_nchw, conv_w, bn_gamma, bn_beta, bn_mean, bn_var, eps=1e-5):
    """Pure-JAX reference matching PyTorch Focus (eval-mode BN, Mish)."""
    sd = jnp.concatenate(
        [x_nchw[..., 0::2, 0::2],
         x_nchw[..., 1::2, 0::2],
         x_nchw[..., 0::2, 1::2],
         x_nchw[..., 1::2, 1::2]],
        axis=1)
    y = jnp.einsum('bchw,oc->bohw', sd, conv_w[:, :, 0, 0])
    scale = bn_gamma / jnp.sqrt(bn_var + eps)
    bias = bn_beta - bn_mean * scale
    y = y * scale[None, :, None, None] + bias[None, :, None, None]
    # PyTorch softplus with threshold=20, then tanh.
    sp = jnp.where(y > 20.0, y, jnp.log1p(jnp.exp(jnp.minimum(y, 20.0))))
    return y * jnp.tanh(sp)


if __name__ == "__main__":
    key = jax.random.PRNGKey(0)
    k_x, k_w, k_g, k_b, k_m, k_v = jax.random.split(key, 6)

    B, C, H, W = 2, 4, 16, 16
    Cout = 8

    x = jax.random.normal(k_x, (B, C, H, W), dtype=jnp.float32)

    # Deterministic synthetic parameters (ConvBnMish: k=1, s=1, p=0, groups=1,
    # apply_act=True, BN in eval mode).
    conv_w = 0.1 * jax.random.normal(k_w, (Cout, 4 * C, 1, 1), dtype=jnp.float32)
    bn_gamma = 1.0 + 0.05 * jax.random.normal(k_g, (Cout,), dtype=jnp.float32)
    bn_beta = 0.05 * jax.random.normal(k_b, (Cout,), dtype=jnp.float32)
    bn_mean = 0.05 * jax.random.normal(k_m, (Cout,), dtype=jnp.float32)
    bn_var = 1.0 + 0.1 * jax.nn.softplus(
        jax.random.normal(k_v, (Cout,), dtype=jnp.float32))

    out = focus_forward(x, conv_w, bn_gamma, bn_beta, bn_mean, bn_var)
    out = jax.block_until_ready(out)

    ref = _reference(x, conv_w, bn_gamma, bn_beta, bn_mean, bn_var)
    assert out.shape == (B, Cout, H // 2, W // 2), out.shape
    max_err = float(jnp.max(jnp.abs(out - ref)))
    assert jnp.allclose(out, ref, atol=2e-4, rtol=2e-4), max_err

    print("KERNEL_OK")
</pallas_src>

<mosaic_0001>
module attributes {stable_mosaic.version = 11 : i64} {
  func.func @_focus_kernel(%arg0: i32, %arg1: i32, %arg2: memref<1x16x64xf32, #tpu.memory_space<vmem>>, %arg3: memref<8x16xf32, #tpu.memory_space<vmem>>, %arg4: memref<8x1xf32, #tpu.memory_space<vmem>>, %arg5: memref<1x8x64xf32, #tpu.memory_space<vmem>>) attributes {dimension_semantics = [#tpu.dimension_semantics<parallel>, #tpu.dimension_semantics<parallel>], iteration_bounds = array<i64: 2, 1>, scalar_prefetch = 0 : i64, scratch_operands = 0 : i64, tpu.core_type = #tpu.core_type<tc>, window_params = [{transform_indices = @transform_0, window_bounds = array<i64: 1, 16, 64>}, {pipeline_mode = #tpu.pipeline_mode<synchronous>, transform_indices = @transform_1, window_bounds = array<i64: 8, 16>}, {pipeline_mode = #tpu.pipeline_mode<synchronous>, transform_indices = @transform_2, window_bounds = array<i64: 8, 1>}, {transform_indices = @transform_3, window_bounds = array<i64: 1, 8, 64>}]} {
    %c0 = arith.constant 0 : index
    %c0_0 = arith.constant 0 : index
    %0 = vector.load %arg3[%c0, %c0_0] : memref<8x16xf32, #tpu.memory_space<vmem>>, vector<8x16xf32>
    %c0_1 = arith.constant 0 : index
    %c0_2 = arith.constant 0 : index
    %c0_3 = arith.constant 0 : index
    %1 = vector.load %arg2[%c0_1, %c0_2, %c0_3] : memref<1x16x64xf32, #tpu.memory_space<vmem>>, vector<1x16x64xf32>
    %2 = vector.shape_cast %1 : vector<1x16x64xf32> to vector<16x64xf32>
    %cst = arith.constant dense<0.000000e+00> : vector<8x64xf32>
    %3 = tpu.matmul %0, %2, %cst {dimension_numbers = #tpu.dot_dimension_numbers<[1], [0], [0], [1], [0, 0, 1, 1], [], []>} : vector<8x16xf32>, vector<16x64xf32>, vector<8x64xf32> -> vector<8x64xf32>
    %c0_4 = arith.constant 0 : index
    %c0_5 = arith.constant 0 : index
    %4 = vector.load %arg4[%c0_4, %c0_5] : memref<8x1xf32, #tpu.memory_space<vmem>>, vector<8x1xf32>
    %5 = vector.broadcast %4 : vector<8x1xf32> to vector<8x64xf32>
    %6 = arith.addf %3, %5 : vector<8x64xf32>
    %cst_6 = arith.constant 3.000000e+01 : f32
    %7 = vector.broadcast %cst_6 : f32 to vector<8x64xf32>
    %8 = arith.minimumf %6, %7 : vector<8x64xf32>
    %9 = math.exp %8 : vector<8x64xf32>
    %cst_7 = arith.constant 1.000000e+00 : f32
    %10 = vector.broadcast %cst_7 : f32 to vector<8x64xf32>
    %11 = arith.addf %10, %9 : vector<8x64xf32>
    %cst_8 = arith.constant 1.000000e+00 : f32
    %12 = vector.broadcast %cst_8 : f32 to vector<8x64xf32>
    %13 = arith.addf %12, %9 : vector<8x64xf32>
    %14 = arith.mulf %11, %13 : vector<8x64xf32>
    %cst_9 = arith.constant 1.000000e+00 : f32
    %15 = vector.broadcast %cst_9 : f32 to vector<8x64xf32>
    %16 = arith.addf %14, %15 : vector<8x64xf32>
    %17 = tpu.reciprocal %16 {approx = true} : vector<8x64xf32> -> vector<8x64xf32>
    %18 = arith.mulf %16, %17 : vector<8x64xf32>
    %cst_10 = arith.constant 2.000000e+00 : f32
    %19 = vector.broadcast %cst_10 : f32 to vector<8x64xf32>
    %20 = arith.subf %19, %18 : vector<8x64xf32>
    %21 = arith.mulf %17, %20 : vector<8x64xf32>
    %cst_11 = arith.constant 2.000000e+00 : f32
    %22 = vector.broadcast %cst_11 : f32 to vector<8x64xf32>
    %23 = arith.mulf %22, %21 : vector<8x64xf32>
    %cst_12 = arith.constant 1.000000e+00 : f32
    %24 = vector.broadcast %cst_12 : f32 to vector<8x64xf32>
    %25 = arith.subf %24, %23 : vector<8x64xf32>
    %26 = arith.mulf %6, %25 : vector<8x64xf32>
    %c0_13 = arith.constant 0 : index
    %c0_14 = arith.constant 0 : index
    %c0_15 = arith.constant 0 : index
    %27 = vector.load %arg5[%c0_13, %c0_14, %c0_15] : memref<1x8x64xf32, #tpu.memory_space<vmem>>, vector<1x8x64xf32>
    %28 = vector.shape_cast %27 : vector<1x8x64xf32> to vector<8x64xf32>
    %29 = vector.shape_cast %26 : vector<8x64xf32> to vector<1x8x64xf32>
    tpu.vector_store %arg5[%c0_13, %c0_14, %c0_15], %29 {strides = array<i32>} : memref<1x8x64xf32, #tpu.memory_space<vmem>>, vector<1x8x64xf32>,
    return
  }
  func.func @transform_0(%arg0: i32, %arg1: i32) -> (i32, i32, i32) {
    %c0_i32 = arith.constant 0 : i32
    %c0_i32_0 = arith.constant 0 : i32
    return %arg0, %c0_i32, %arg1 : i32, i32, i32
  }
  func.func @transform_1(%arg0: i32, %arg1: i32) -> (i32, i32) {
    %c0_i32 = arith.constant 0 : i32
    %c0_i32_0 = arith.constant 0 : i32
    %c0_i32_1 = arith.constant 0 : i32
    return %c0_i32, %c0_i32_0 : i32, i32
  }
  func.func @transform_2(%arg0: i32, %arg1: i32) -> (i32, i32) {
    %c0_i32 = arith.constant 0 : i32
    %c0_i32_0 = arith.constant 0 : i32
    %c0_i32_1 = arith.constant 0 : i32
    return %c0_i32, %c0_i32_0 : i32, i32
  }
  func.func @transform_3(%arg0: i32, %arg1: i32) -> (i32, i32, i32) {
    %c0_i32 = arith.constant 0 : i32
    %c0_i32_0 = arith.constant 0 : i32
    return %arg0, %c0_i32, %arg1 : i32, i32, i32
  }
}

</mosaic_0001>

<llo_original>
// kernel: tpu_custom_call.1
$region0: #{tpu_custom_call.1}
  #allocation0 [shape = 'u32[]', space=smem, size = 0x4, offset = 0x4, fixed_abs, tag = 'smem constant byte address 0x4 - core index']
  #allocation1 [shape = 'u32[72,128]{1,0:T(1,128)}', space=vmem, size = 0x9000, scoped, tag = 'internal scratch']
  %s0 = inlined_call_operand.hbm [shape: f32[2,16,64], index: 0, kind: input, shape index: {}]
  %s1 = inlined_call_operand.vmem [shape: f32[8,16], index: 1, kind: input, shape index: {}]
  %s2 = inlined_call_operand.vmem [shape: f32[8,1], index: 2, kind: input, shape index: {}]
  %s3 = inlined_call_operand.hbm [shape: f32[2,8,64], index: 3, kind: output, shape index: {}]
  %s4 = sld [smem:[#allocation0]]
  $region49: #{tpu_custom_call.1} parent=0
    _
  %s6 = ssub.s32 1, %s4
  %s7 = scalar_select 0, %s6, %s4
  $region1: #{tpu_custom_call.1} parent=0
    #allocation2 [shape = 'u8[16384]{0}', space=vmem, size = 0x4000, scoped, tag = 'input window, operand 0']
    #allocation3 [shape = 's32[2]{0}', space=sflag, size = 0x8, scoped, tag = 'scoped memory for tpu_custom_call.1']
    #allocation4 [shape = 's32[2]{0}', space=sflag, size = 0x8, scoped, tag = 'scoped memory for tpu_custom_call.1']
    #allocation5 [shape = 'u8[8192]{0}', space=vmem, size = 0x2000, scoped, tag = 'output window, operand 0']
    %8 = vsyncpa [#allocation3], 0
    %s9 = scalar_lea.sflag [#allocation3], 1
    %10 = vsyncpa %s9, 0
    %11 = vsyncpa [#allocation4], 0
    %s12 = scalar_lea.sflag [#allocation4], 1
    %13 = vsyncpa %s12, 0
    loop: start=0, step=1, limit=4
    $region2: #{tpu_custom_call.1} parent=1 // loop_pre_header
      _
    $region3: #{tpu_custom_call.1} parent=1 // loop_header
      %s15 = sphi 0, %s19
      %p16 = scmp.ge.s32.totalorder %s15, 4
      %s22 = sphi 0, %s34
      %s23 = sphi 0, %s30
      %s24 = sphi 0, %s22
      %s25 = sphi 0, %s23
      %s26 = sphi 0, %s24
      %s27 = sphi 0, %s25
      %s39 = sphi 0, %s41
      %s42 = sphi 0, %s39
      %s43 = sphi 0, %s42
      %s59 = sphi 0, %s43
      %s63 = sphi 0, %s63
      %s65 = sphi 0, %s63
      %s66 = sphi 0, %s65
      %s80 = sphi 0, %s66
      %s84 = sphi 0, %s84
      %s86 = sphi 0, %s84
      %s87 = sphi 0, %s86
      %s101 = sphi 0, %s87
      %s109 = sphi 0, %s111
      %s112 = sphi 0, %s109
      %s113 = sphi 0, %s112
      %s129 = sphi 0, %s113
    $region4: #{tpu_custom_call.1} parent=1 // loop_header_branch
      %18 = sbr.rel (%p16) target = $region8
    $region5: #{tpu_custom_call.1} parent=1 // loop_body
      %s20 = ssub.s32 %s15, 1
      %s21 = ssub.s32 %s15, 2
      %s28 = sadd.s32 1, %s23
      %p29 = scmp.ge.s32.totalorder %s28, 1
      %s30 = scalar_select %p29, 0, %s28
      %s31 = sadd.s32 1, %s22
      %s32 = scalar_select %p29, %s31, %s22
      %p33 = scmp.ge.s32.totalorder %s32, 2
      %s34 = scalar_select %p33, 0, %s32
      %s35 = ssub.s32 %s22, %s34
      %s36 = ssub.s32 %s23, %s30
      %s37 = sor.u32 %s35, %s36
      %p38 = scmp.eq.s32.totalorder %s37, 0
      %s40 = sadd.s32 %s39, 1
      %s41 = scalar_select %p38, %s39, %s40
      %p44 = pneg %p38
      %p45 = scmp.eq.s32.totalorder %s15, 1
      %p46 = por %p44, %p45
      %p47 = scmp.ne.s32.totalorder %s39, %s42
      %p48 = scmp.eq.s32.totalorder %s15, 0
      %p49 = por %p47, %p48
      %p50 = scmp.ne.s32.totalorder %s39, %s42
      %p51 = scmp.eq.s32.totalorder %s20, 1
      %p52 = por %p50, %p51
      %p53 = scmp.ne.s32.totalorder %s42, %s43
      %p54 = scmp.eq.s32.totalorder %s20, 0
      %p55 = por %p53, %p54
      %p56 = scmp.ne.s32.totalorder %s42, %s43
      %p57 = scmp.eq.s32.totalorder %s21, 1
      %p58 = por %p56, %p57
      %p60 = scmp.ne.s32.totalorder %s43, %s59
      %p61 = scmp.eq.s32.totalorder %s21, 0
      %p62 = por %p60, %p61
      %s64 = sadd.s32 %s63, 1
      %p67 = scmp.eq.s32.totalorder %s15, 1
      %p68 = scmp.ne.s32.totalorder %s63, %s65
      %p69 = scmp.eq.s32.totalorder %s15, 0
      %p70 = por %p68, %p69
      %p71 = scmp.ne.s32.totalorder %s63, %s65
      %p72 = scmp.eq.s32.totalorder %s20, 1
      %p73 = por %p71, %p72
      %p74 = scmp.ne.s32.totalorder %s65, %s66
      %p75 = scmp.eq.s32.totalorder %s20, 0
      %p76 = por %p74, %p75
      %p77 = scmp.ne.s32.totalorder %s65, %s66
      %p78 = scmp.eq.s32.totalorder %s21, 1
      %p79 = por %p77, %p78
      %p81 = scmp.ne.s32.totalorder %s66, %s80
      %p82 = scmp.eq.s32.totalorder %s21, 0
      %p83 = por %p81, %p82
      %s85 = sadd.s32 %s84, 1
      %p88 = scmp.eq.s32.totalorder %s15, 1
      %p89 = scmp.ne.s32.totalorder %s84, %s86
      %p90 = scmp.eq.s32.totalorder %s15, 0
      %p91 = por %p89, %p90
      %p92 = scmp.ne.s32.totalorder %s84, %s86
      %p93 = scmp.eq.s32.totalorder %s20, 1
      %p94 = por %p92, %p93
      %p95 = scmp.ne.s32.totalorder %s86, %s87
      %p96 = scmp.eq.s32.totalorder %s20, 0
      %p97 = por %p95, %p96
      %p98 = scmp.ne.s32.totalorder %s86, %s87
      %p99 = scmp.eq.s32.totalorder %s21, 1
      %p100 = por %p98, %p99
      %p102 = scmp.ne.s32.totalorder %s87, %s101
      %p103 = scmp.eq.s32.totalorder %s21, 0
      %p104 = por %p102, %p103
      %s105 = ssub.s32 %s22, %s34
      %s106 = ssub.s32 %s23, %s30
      %s107 = sor.u32 %s105, %s106
      %p108 = scmp.eq.s32.totalorder %s107, 0
      %s110 = sadd.s32 %s109, 1
      %s111 = scalar_select %p108, %s109, %s110
      %p114 = pneg %p108
      %p115 = scmp.eq.s32.totalorder %s15, 1
      %p116 = por %p114, %p115
      %p117 = scmp.ne.s32.totalorder %s109, %s112
      %p118 = scmp.eq.s32.totalorder %s15, 0
      %p119 = por %p117, %p118
      %p120 = scmp.ne.s32.totalorder %s109, %s112
      %p121 = scmp.eq.s32.totalorder %s20, 1
      %p122 = por %p120, %p121
      %p123 = scmp.ne.s32.totalorder %s112, %s113
      %p124 = scmp.eq.s32.totalorder %s20, 0
      %p125 = por %p123, %p124
      %p126 = scmp.ne.s32.totalorder %s112, %s113
      %p127 = scmp.eq.s32.totalorder %s21, 1
      %p128 = por %p126, %p127
      %p130 = scmp.ne.s32.totalorder %s113, %s129
      %p131 = scmp.eq.s32.totalorder %s21, 0
      %p132 = por %p130, %p131
      %p133 = scmp.le.s32.totalorder 1, %s15
      %p134 = scmp.lt.s32.totalorder %s15, 3
      %p135 = pnand %p133, %p134
      %p136 = pneg %p135
      // Predicated region
      $region9: #{tpu_custom_call.1} parent=5 // pred_check
        _
      $region10: #{tpu_custom_call.1} parent=5 // pred_check_branch
        %138 = sbr.rel (%p135) target = $region12
      $region11: #{tpu_custom_call.1} parent=5 // pred_region
        %s139 = ssub.s32 %s15, 1
        // Predicated region
        $region13: #{tpu_custom_call.1} parent=11 // pred_check
          %p140 = pneg %p76
        $region14: #{tpu_custom_call.1} parent=11 // pred_check_branch
          %142 = sbr.rel (%p140) target = $region16
        $region15: #{tpu_custom_call.1} parent=11 // pred_region
          _
        $region16: #{tpu_custom_call.1} parent=11 // pred_fallthru
          _
        // Predicated region
        $region17: #{tpu_custom_call.1} parent=11 // pred_check
          %p143 = pneg %p97
        $region18: #{tpu_custom_call.1} parent=11 // pred_check_branch
          %145 = sbr.rel (%p143) target = $region20
        $region19: #{tpu_custom_call.1} parent=11 // pred_region
          _
        $region20: #{tpu_custom_call.1} parent=11 // pred_fallthru
          _
      $region12: #{tpu_custom_call.1} parent=5 // pred_fallthru
        _
      %p146 = scmp.lt.s32.totalorder %s15, 2
      // Predicated region
      $region21: #{tpu_custom_call.1} parent=5 // pred_check
        %p147 = pneg %p146
      $region22: #{tpu_custom_call.1} parent=5 // pred_check_branch
        %149 = sbr.rel (%p147) target = $region24
      $region23: #{tpu_custom_call.1} parent=5 // pred_region
        // Predicated region
        $region25: #{tpu_custom_call.1} parent=23 // pred_check
          %p150 = pneg %p49
        $region26: #{tpu_custom_call.1} parent=23 // pred_check_branch
          %152 = sbr.rel (%p150) target = $region28
        $region27: #{tpu_custom_call.1} parent=23 // pred_region
          %s153 = sand.u32 %s39, 1
          %s154 = scalar_lea.sflag [#allocation3], %s153
          %s155 = sand.u32 %s39, 1
          %s156 = smul.addr %s155, 16
          %s157 = scalar_lea.vmem [#allocation2], %s156
          %159 = vsyncadd %s154, 0
          %s160 = smul.addr %s22, 2
          %s161 = sadd.s32 %s23, %s160
          %s162 = smul.addr %s161, 8
          %s163 = scalar_lea.hbm %s0, %s162
          %s164 = sshll.u32 %s163, 4
          %s165 = int_to_ptr.hbm [resolvable:$true] %s164
          %s166 = sshll.u32 %s157, 4
          %s167 = int_to_ptr.vmem [resolvable:$true] %s166
          %172 = dma.hbm_to_vmem [thread:$0]  %s165, 256, %s167, %s154, 128, 128, 8
        $region28: #{tpu_custom_call.1} parent=23 // pred_fallthru
          _
      $region24: #{tpu_custom_call.1} parent=5 // pred_fallthru
        _
      %p173 = scmp.le.s32.totalorder 1, %s15
      %p174 = scmp.lt.s32.totalorder %s15, 3
      %p175 = pnand %p173, %p174
      %p176 = pneg %p175
      // Predicated region
      $region29: #{tpu_custom_call.1} parent=5 // pred_check
        _
      $region30: #{tpu_custom_call.1} parent=5 // pred_check_branch
        %178 = sbr.rel (%p175) target = $region32
      $region31: #{tpu_custom_call.1} parent=5 // pred_region
        %s179 = ssub.s32 %s15, 1
        %s180 = sand.u32 %s42, 1
        %s181 = scalar_lea.sflag [#allocation3], %s180
        %s182 = sand.u32 %s42, 1
        %s183 = smul.addr %s182, 16
        %s184 = scalar_lea.vmem [#allocation2], %s183
        // Predicated region
        $region33: #{tpu_custom_call.1} parent=31 // pred_check
          %p185 = pneg %p55
        $region34: #{tpu_custom_call.1} parent=31 // pred_check_branch
          %187 = sbr.rel (%p185) target = $region36
        $region35: #{tpu_custom_call.1} parent=31 // pred_region
          %189 = dma.done %s181, 256
        $region36: #{tpu_custom_call.1} parent=31 // pred_fallthru
          _
        %s190 = sand.u32 %s42, 1
        %s191 = scalar_lea.sflag [#allocation3], %s190
        %s192 = sand.u32 %s42, 1
        %s193 = smul.addr %s192, 16
        %s194 = scalar_lea.vmem [#allocation2], %s193
        %p195 = pneg %p55
        %p196 = pneg %p52
        %p197 = pneg %p76
        %p198 = pneg %p73
        %p199 = pneg %p97
        %p200 = pneg %p94
        %p201 = pneg %p125
        %p202 = pneg %p122
        %s203 = sand.u32 %s112, 1
        %s204 = scalar_lea.sflag [#allocation4], %s203
        %s205 = sand.u32 %s112, 1
        %s206 = smul.addr %s205, 8
        %s207 = scalar_lea.vmem [#allocation5], %s206
        %v208 = vld [vmem:[%s1] sm:$0xff]
        %v209 = vld [vmem:[%s184] sm:$0xff]
        %v210 = vld [vmem:[%s184 + $0x8] sm:$0xff]
        %v211 = vld [vmem:[%s2] sm:$0xff]
        %213 = vset.pattern.permute.xlu0 0
        %214 = vperm.xlu0 %213, %v211
        %v215 = vpop.permute.xlu0 %214
        %vm217 = vcmask 130048
        %v219 = vsel %vm217, %v208, 0
        %221 = vmatpush.msra.mxu0 0.0
        %222 = vmatpush.msra.mxu0 0.0
        %223 = vmatpush.msra.mxu0 0.0
        %224 = vmatpush.msra.mxu0 0.0
        %225 = vmatpush.msra.mxu0 0.0
        %226 = vmatpush.msra.mxu0 0.0
        %227 = vmatpush.msra.mxu0 0.0
        %228 = vmatpush.msra.mxu0 0.0
        %229 = vmatpush.msra.mxu0 0.0
        %230 = vmatpush.msra.mxu0 0.0
        %231 = vmatpush.msra.mxu0 0.0
        %232 = vmatpush.msra.mxu0 0.0
        %233 = vmatpush.msra.mxu0 0.0
        %234 = vmatpush.msra.mxu0 0.0
        %235 = vmatpush.msra.mxu0 %v210
        %236 = vmatpush.msra.mxu0 %v209
        %237 = vmatmul.f32.gmra.mxu0 %v219
        %v238 = vpop.f32.mrf.mxu0
        %v239 = vadd.f32 %v215, %v238
        %240 = vdwg.mxu0
        %v241 = vmin.f32 %v239, 30.0
        %v242 = vmul.f32 %v241, 1.442695
        %v243 = vpow.pop %v242
        %v244 = vadd.f32 %v243, 1.0
        %v245 = vmul.f32 %v244, %v244
        %v246 = vadd.f32 %v245, 1.0
        %v247 = vrcp.pop %v246
        %v248 = vmul.f32 %v246, %v247
        %v249 = vsub.f32 2.0, %v248
        %v250 = vmul.f32 %v247, %v249
        %v251 = vmul.f32 %v250, 2.0
        %v252 = vsub.f32 1.0, %v251
        %v253 = vmul.f32 %v239, %v252
        %vm254 = vcmask 523264
        %255 = vst.msk [vmem:[%s207] sm:$0xff] %vm254, %v253
        %s256 = sand.u32 %s112, 1
        %s257 = scalar_lea.sflag [#allocation4], %s256
        %s258 = sand.u32 %s112, 1
        %s259 = smul.addr %s258, 8
        %s260 = scalar_lea.vmem [#allocation5], %s259
        // Predicated region
        $region37: #{tpu_custom_call.1} parent=31 // pred_check
          %p261 = pneg %p122
        $region38: #{tpu_custom_call.1} parent=31 // pred_check_branch
          %263 = sbr.rel (%p261) target = $region40
        $region39: #{tpu_custom_call.1} parent=31 // pred_region
          %265 = vsyncadd %s257, 0
          %s266 = sadd.s32 %s25, %s24
          %s267 = smul.addr %s266, 8
          %s268 = scalar_lea.hbm %s3, %s267
          %s270 = sshll.u32 %s260, 4
          %s271 = int_to_ptr.vmem [resolvable:$true] %s270
          %s272 = sshll.u32 %s268, 4
          %s273 = int_to_ptr.hbm [resolvable:$true] %s272
          %275 = dma.vmem_to_hbm [thread:$0]  %s271, 128, %s273, %s257
        $region40: #{tpu_custom_call.1} parent=31 // pred_fallthru
          _
      $region32: #{tpu_custom_call.1} parent=5 // pred_fallthru
        _
      %p276 = scmp.le.s32.totalorder 2, %s15
      // Predicated region
      $region41: #{tpu_custom_call.1} parent=5 // pred_check
        %p277 = pneg %p276
      $region42: #{tpu_custom_call.1} parent=5 // pred_check_branch
        %279 = sbr.rel (%p277) target = $region44
      $region43: #{tpu_custom_call.1} parent=5 // pred_region
        %s280 = ssub.s32 %s15, 2
        // Predicated region
        $region45: #{tpu_custom_call.1} parent=43 // pred_check
          %p281 = pneg %p128
        $region46: #{tpu_custom_call.1} parent=43 // pred_check_branch
          %283 = sbr.rel (%p281) target = $region48
        $region47: #{tpu_custom_call.1} parent=43 // pred_region
          %s284 = sand.u32 %s113, 1
          %s285 = scalar_lea.sflag [#allocation4], %s284
          %s286 = sand.u32 %s113, 1
          %s287 = smul.addr %s286, 8
          %s288 = scalar_lea.vmem [#allocation5], %s287
          %290 = dma.done %s285, 128
        $region48: #{tpu_custom_call.1} parent=43 // pred_fallthru
          _
      $region44: #{tpu_custom_call.1} parent=5 // pred_fallthru
        _
    $region6: #{tpu_custom_call.1} parent=1 // loop_footer
      %s19 = sadd.s32 1, %s15
    $region7: #{tpu_custom_call.1} parent=1 // loop_footer_branch
      %14 = sbr.rel target = $region3
    $region8: #{tpu_custom_call.1} parent=1 // loop_exit
      _
    %291 = vsyncpa [#allocation3], 1
    %s292 = scalar_lea.sflag [#allocation3], 1
    %293 = vsyncpa %s292, 1
    %294 = vsyncpa [#allocation4], 1
    %s295 = scalar_lea.sflag [#allocation4], 1
    %296 = vsyncpa %s295, 1

</llo_original>
